<compile_context>
chip_gen: v7x
topology: tpu7x:2x2x1
jax: 0.10.0
libtpu: 0.0.40
codegen_flags: <defaults>
</compile_context>

<pallas_src>
import functools

import jax
import jax.numpy as jnp
from jax.experimental import pallas as pl
from jax.experimental.pallas import tpu as pltpu


def _bert_output_kernel(h_ref, res_ref, w_ref, b_ref, g_ref, beta_ref, o_ref,
                        *, eps):
    # h_ref:    (TM, I)   intermediate activations tile (input dtype)
    # res_ref:  (TM, H)   residual input tile
    # w_ref:    (I,  H)   dense weight (resident: constant index_map)
    # b_ref:    (1,  H)   dense bias
    # g_ref:    (1,  H)   LayerNorm gamma
    # beta_ref: (1,  H)   LayerNorm beta
    # o_ref:    (TM, H)   output tile

    # MXU matmul in the streams' native dtype, f32 accumulation.
    y = jnp.dot(h_ref[...], w_ref[...], preferred_element_type=jnp.float32)

    # Dropout is identity in eval/inference mode.
    # Fold bias into the residual add -> one broadcast + one VPU add pass.
    bias = b_ref[...].astype(jnp.float32)
    res = res_ref[...].astype(jnp.float32)
    y = y + (res + bias)

    # LayerNorm over the hidden (lane) axis; single-pass statistics:
    #   var = E[y^2] - E[y]^2   (clamped to >= 0 to guard f32 cancellation)
    mean = jnp.mean(y, axis=-1, keepdims=True)
    mean_sq = jnp.mean(y * y, axis=-1, keepdims=True)
    var = jnp.maximum(mean_sq - mean * mean, 0.0)
    inv = jax.lax.rsqrt(var + eps)

    gamma = g_ref[...].astype(jnp.float32)
    beta = beta_ref[...].astype(jnp.float32)
    o_ref[...] = ((y - mean) * inv * gamma + beta).astype(o_ref.dtype)


def _round_up(x, m):
    return ((x + m - 1) // m) * m


def _vmem_capacity_bytes():
    """Physical VMEM of the current generation (per TensorCore)."""
    try:
        info = pltpu.get_tpu_info()
        cap = getattr(info, "vmem_capacity_bytes", None)
        if cap:
            return int(cap)
    except Exception:
        pass
    return 64 << 20  # conservative fallback (v7x per-TC)


def _footprint_bytes(tile_m, I, H, act_dtype, res_dtype, w_dtype, out_dtype):
    """Estimated VMEM footprint for one pipelined grid step."""
    w_b = I * H * jnp.dtype(w_dtype).itemsize            # resident weight
    h_b = 2 * tile_m * I * jnp.dtype(act_dtype).itemsize  # double-buffered act
    r_b = 2 * tile_m * H * jnp.dtype(res_dtype).itemsize  # residual tiles
    o_b = 2 * tile_m * H * jnp.dtype(out_dtype).itemsize  # output tiles
    small = 6 * H * 4                                      # bias/gamma/beta
    return w_b + h_b + r_b + o_b + small


def bert_output(hidden_states, input_tensor, weight, bias, gamma, beta,
                *, eps=1e-12, tile_m=None):
    """hidden_states: [B, S, I], input_tensor: [B, S, H] -> [B, S, H]."""
    B, S, I = hidden_states.shape
    H = input_tensor.shape[-1]
    T = B * S
    out_dtype = hidden_states.dtype

    # bf16-native MXU path: match the resident weight to bf16 activations.
    if hidden_states.dtype == jnp.bfloat16 and weight.dtype != jnp.bfloat16:
        weight = weight.astype(jnp.bfloat16)

    # Token tile: dtype-aware default, multiple of 8, padded grid (no divisor
    # search).  Shrink if the footprint would not fit the generation's VMEM.
    if tile_m is None:
        tile_m = 512 if hidden_states.dtype == jnp.bfloat16 else 256
    tm = max(8, _round_up(min(tile_m, _round_up(T, 8)), 8))

    cap = _vmem_capacity_bytes()
    budget = int(cap * 0.85)  # ~15% headroom for compiler scratch
    while tm > 64 and _footprint_bytes(
            tm, I, H, hidden_states.dtype, input_tensor.dtype,
            weight.dtype, out_dtype) > budget:
        tm = max(64, _round_up(tm // 2, 8))

    T_pad = pl.cdiv(T, tm) * tm

    h2 = hidden_states.reshape(T, I)
    r2 = input_tensor.reshape(T, H)
    if T_pad != T:
        pad = T_pad - T
        h2 = jnp.pad(h2, ((0, pad), (0, 0)))
        r2 = jnp.pad(r2, ((0, pad), (0, 0)))
    b2 = bias.reshape(1, H)
    g2 = gamma.reshape(1, H)
    beta2 = beta.reshape(1, H)

    footprint = _footprint_bytes(tm, I, H, hidden_states.dtype,
                                 input_tensor.dtype, weight.dtype, out_dtype)
    vmem_limit = int(min(max(int(1.5 * footprint), 32 << 20), budget))

    kernel = functools.partial(_bert_output_kernel, eps=eps)

    out = pl.pallas_call(
        kernel,
        out_shape=jax.ShapeDtypeStruct((T_pad, H), out_dtype),
        grid_spec=pltpu.PrefetchScalarGridSpec(
            num_scalar_prefetch=0,
            grid=(T_pad // tm,),
            in_specs=[
                pl.BlockSpec((tm, I), lambda i: (i, 0)),   # activation tile
                pl.BlockSpec((tm, H), lambda i: (i, 0)),   # residual tile
                pl.BlockSpec((I, H), lambda i: (0, 0)),    # weight (resident)
                pl.BlockSpec((1, H), lambda i: (0, 0)),    # bias
                pl.BlockSpec((1, H), lambda i: (0, 0)),    # gamma
                pl.BlockSpec((1, H), lambda i: (0, 0)),    # beta
            ],
            out_specs=pl.BlockSpec((tm, H), lambda i: (i, 0)),
        ),
        compiler_params=pltpu.CompilerParams(
            dimension_semantics=("parallel",),   # shards token tiles on v7x 2-TC
            vmem_limit_bytes=vmem_limit,
        ),
    )(h2, r2, weight, b2, g2, beta2)

    if T_pad != T:
        out = out[:T]
    return out.reshape(B, S, H)


def _reference(hidden_states, input_tensor, weight, bias, gamma, beta, eps):
    y = jnp.einsum("bsi,ih->bsh", hidden_states, weight) + bias
    y = y + input_tensor
    mean = jnp.mean(y, axis=-1, keepdims=True)
    var = jnp.mean((y - mean) ** 2, axis=-1, keepdims=True)
    return (y - mean) / jnp.sqrt(var + eps) * gamma + beta


if __name__ == "__main__":
    # Small BERT-like config; hidden_size kept a multiple of 128 so the output
    # lane dim is dense (no masked partial stores).
    batch, seq = 2, 16
    intermediate_size = 512
    hidden_size = 128
    eps = 1e-12

    key = jax.random.PRNGKey(0)
    k1, k2, k3, k4, k5, k6 = jax.random.split(key, 6)

    hidden_states = jax.random.normal(
        k1, (batch, seq, intermediate_size), dtype=jnp.float32)
    input_tensor = jax.random.normal(
        k2, (batch, seq, hidden_size), dtype=jnp.float32)

    # Deterministic synthetic parameters (not a checkpoint).
    weight = jax.random.normal(
        k3, (intermediate_size, hidden_size), dtype=jnp.float32) * 0.02
    bias = jax.random.normal(k4, (hidden_size,), dtype=jnp.float32) * 0.02
    gamma = jnp.ones((hidden_size,), dtype=jnp.float32) \
        + 0.01 * jax.random.normal(k5, (hidden_size,), dtype=jnp.float32)
    beta = 0.01 * jax.random.normal(k6, (hidden_size,), dtype=jnp.float32)

    # TODO(synk): dropout is identity here (inference); training-mode dropout
    # with a PRNG mask is not implemented.
    ref = _reference(hidden_states, input_tensor, weight, bias, gamma, beta,
                     eps)

    # 1) Default tiling (T <= tile_m -> single tile, no padding).
    out = bert_output(hidden_states, input_tensor, weight, bias, gamma, beta,
                      eps=eps)
    out = jax.block_until_ready(out)
    assert out.shape == (batch, seq, hidden_size)
    assert jnp.allclose(out, ref, atol=1e-4, rtol=1e-4), "mismatch (default)"

    # 2) Force the padded multi-step grid path (tile_m=24 -> T=32 padded to 48).
    out2 = bert_output(hidden_states, input_tensor, weight, bias, gamma, beta,
                       eps=eps, tile_m=24)
    out2 = jax.block_until_ready(out2)
    assert jnp.allclose(out2, ref, atol=1e-4, rtol=1e-4), "mismatch (padded)"

    print("KERNEL_OK")
</pallas_src>

<mosaic_0001>
module attributes {stable_mosaic.version = 11 : i64} {
  func.func @_bert_output_kernel(%arg0: i32, %arg1: memref<32x512xf32, #tpu.memory_space<vmem>>, %arg2: memref<32x128xf32, #tpu.memory_space<vmem>>, %arg3: memref<512x128xf32, #tpu.memory_space<vmem>>, %arg4: memref<1x128xf32, #tpu.memory_space<vmem>>, %arg5: memref<1x128xf32, #tpu.memory_space<vmem>>, %arg6: memref<1x128xf32, #tpu.memory_space<vmem>>, %arg7: memref<32x128xf32, #tpu.memory_space<vmem>>) attributes {dimension_semantics = [#tpu.dimension_semantics<parallel>], iteration_bounds = array<i64: 1>, scalar_prefetch = 0 : i64, scratch_operands = 0 : i64, tpu.core_type = #tpu.core_type<tc>, window_params = [{transform_indices = @transform_0, window_bounds = array<i64: 32, 512>}, {transform_indices = @transform_1, window_bounds = array<i64: 32, 128>}, {pipeline_mode = #tpu.pipeline_mode<synchronous>, transform_indices = @transform_2, window_bounds = array<i64: 512, 128>}, {pipeline_mode = #tpu.pipeline_mode<synchronous>, transform_indices = @transform_3, window_bounds = array<i64: 1, 128>}, {pipeline_mode = #tpu.pipeline_mode<synchronous>, transform_indices = @transform_4, window_bounds = array<i64: 1, 128>}, {pipeline_mode = #tpu.pipeline_mode<synchronous>, transform_indices = @transform_5, window_bounds = array<i64: 1, 128>}, {transform_indices = @transform_6, window_bounds = array<i64: 32, 128>}]} {
    %c0 = arith.constant 0 : index
    %c0_0 = arith.constant 0 : index
    %0 = vector.load %arg1[%c0, %c0_0] : memref<32x512xf32, #tpu.memory_space<vmem>>, vector<32x512xf32>
    %c0_1 = arith.constant 0 : index
    %c0_2 = arith.constant 0 : index
    %1 = vector.load %arg3[%c0_1, %c0_2] : memref<512x128xf32, #tpu.memory_space<vmem>>, vector<512x128xf32>
    %cst = arith.constant dense<0.000000e+00> : vector<32x128xf32>
    %2 = tpu.matmul %0, %1, %cst {dimension_numbers = #tpu.dot_dimension_numbers<[1], [0], [0], [1], [0, 0, 1, 1], [], []>} : vector<32x512xf32>, vector<512x128xf32>, vector<32x128xf32> -> vector<32x128xf32>
    %c0_3 = arith.constant 0 : index
    %c0_4 = arith.constant 0 : index
    %3 = vector.load %arg4[%c0_3, %c0_4] : memref<1x128xf32, #tpu.memory_space<vmem>>, vector<1x128xf32>
    %c0_5 = arith.constant 0 : index
    %c0_6 = arith.constant 0 : index
    %4 = vector.load %arg2[%c0_5, %c0_6] : memref<32x128xf32, #tpu.memory_space<vmem>>, vector<32x128xf32>
    %5 = vector.broadcast %3 : vector<1x128xf32> to vector<32x128xf32>
    %6 = arith.addf %4, %5 : vector<32x128xf32>
    %7 = arith.addf %2, %6 : vector<32x128xf32>
    %cst_7 = arith.constant dense<0.000000e+00> : vector<32xf32>
    %8 = vector.multi_reduction <add>, %7, %cst_7 [1] : vector<32x128xf32> to vector<32xf32>
    %9 = vector.shape_cast %8 : vector<32xf32> to vector<32x1xf32>
    %cst_8 = arith.constant 1.280000e+02 : f32
    %10 = vector.broadcast %cst_8 : f32 to vector<32x1xf32>
    %11 = arith.divf %9, %10 : vector<32x1xf32>
    %12 = arith.mulf %7, %7 : vector<32x128xf32>
    %cst_9 = arith.constant dense<0.000000e+00> : vector<32xf32>
    %13 = vector.multi_reduction <add>, %12, %cst_9 [1] : vector<32x128xf32> to vector<32xf32>
    %14 = vector.shape_cast %13 : vector<32xf32> to vector<32x1xf32>
    %cst_10 = arith.constant 1.280000e+02 : f32
    %15 = vector.broadcast %cst_10 : f32 to vector<32x1xf32>
    %16 = arith.divf %14, %15 : vector<32x1xf32>
    %17 = arith.mulf %11, %11 : vector<32x1xf32>
    %18 = arith.subf %16, %17 : vector<32x1xf32>
    %cst_11 = arith.constant 0.000000e+00 : f32
    %19 = vector.broadcast %cst_11 : f32 to vector<32x1xf32>
    %20 = arith.maximumf %18, %19 : vector<32x1xf32>
    %cst_12 = arith.constant 9.99999996E-13 : f32
    %21 = vector.broadcast %cst_12 : f32 to vector<32x1xf32>
    %22 = arith.addf %20, %21 : vector<32x1xf32>
    %23 = math.rsqrt %22 : vector<32x1xf32>
    %c0_13 = arith.constant 0 : index
    %c0_14 = arith.constant 0 : index
    %24 = vector.load %arg5[%c0_13, %c0_14] : memref<1x128xf32, #tpu.memory_space<vmem>>, vector<1x128xf32>
    %c0_15 = arith.constant 0 : index
    %c0_16 = arith.constant 0 : index
    %25 = vector.load %arg6[%c0_15, %c0_16] : memref<1x128xf32, #tpu.memory_space<vmem>>, vector<1x128xf32>
    %26 = vector.broadcast %11 : vector<32x1xf32> to vector<32x128xf32>
    %27 = arith.subf %7, %26 : vector<32x128xf32>
    %28 = vector.broadcast %23 : vector<32x1xf32> to vector<32x128xf32>
    %29 = arith.mulf %27, %28 : vector<32x128xf32>
    %30 = vector.broadcast %24 : vector<1x128xf32> to vector<32x128xf32>
    %31 = arith.mulf %29, %30 : vector<32x128xf32>
    %32 = vector.broadcast %25 : vector<1x128xf32> to vector<32x128xf32>
    %33 = arith.addf %31, %32 : vector<32x128xf32>
    %c0_17 = arith.constant 0 : index
    %c0_18 = arith.constant 0 : index
    %34 = vector.load %arg7[%c0_17, %c0_18] : memref<32x128xf32, #tpu.memory_space<vmem>>, vector<32x128xf32>
    tpu.vector_store %arg7[%c0_17, %c0_18], %33 {strides = array<i32>} : memref<32x128xf32, #tpu.memory_space<vmem>>, vector<32x128xf32>,
    return
  }
  func.func @transform_0(%arg0: i32) -> (i32, i32) {
    %c0_i32 = arith.constant 0 : i32
    %c0_i32_0 = arith.constant 0 : i32
    return %arg0, %c0_i32 : i32, i32
  }
  func.func @transform_1(%arg0: i32) -> (i32, i32) {
    %c0_i32 = arith.constant 0 : i32
    %c0_i32_0 = arith.constant 0 : i32
    return %arg0, %c0_i32 : i32, i32
  }
  func.func @transform_2(%arg0: i32) -> (i32, i32) {
    %c0_i32 = arith.constant 0 : i32
    %c0_i32_0 = arith.constant 0 : i32
    %c0_i32_1 = arith.constant 0 : i32
    return %c0_i32, %c0_i32_0 : i32, i32
  }
  func.func @transform_3(%arg0: i32) -> (i32, i32) {
    %c0_i32 = arith.constant 0 : i32
    %c0_i32_0 = arith.constant 0 : i32
    %c0_i32_1 = arith.constant 0 : i32
    return %c0_i32, %c0_i32_0 : i32, i32
  }
  func.func @transform_4(%arg0: i32) -> (i32, i32) {
    %c0_i32 = arith.constant 0 : i32
    %c0_i32_0 = arith.constant 0 : i32
    %c0_i32_1 = arith.constant 0 : i32
    return %c0_i32, %c0_i32_0 : i32, i32
  }
  func.func @transform_5(%arg0: i32) -> (i32, i32) {
    %c0_i32 = arith.constant 0 : i32
    %c0_i32_0 = arith.constant 0 : i32
    %c0_i32_1 = arith.constant 0 : i32
    return %c0_i32, %c0_i32_0 : i32, i32
  }
  func.func @transform_6(%arg0: i32) -> (i32, i32) {
    %c0_i32 = arith.constant 0 : i32
    %c0_i32_0 = arith.constant 0 : i32
    return %arg0, %c0_i32 : i32, i32
  }
}

</mosaic_0001>

<llo_original>
// kernel: tpu_custom_call.1
$region0: #{tpu_custom_call.1}
  #allocation0 [shape = 'u32[]', space=smem, size = 0x4, offset = 0x4, fixed_abs, tag = 'smem constant byte address 0x4 - core index']
  #allocation1 [shape = 'u32[144,128]{1,0:T(1,128)}', space=vmem, size = 0x12000, scoped, tag = 'internal scratch']
  %s0 = inlined_call_operand.hbm [shape: f32[32,512], index: 0, kind: input, shape index: {}]
  %s1 = inlined_call_operand.hbm [shape: f32[32,128], index: 1, kind: input, shape index: {}]
  %s2 = inlined_call_operand.hbm [shape: f32[512,128], index: 2, kind: input, shape index: {}]
  %s3 = inlined_call_operand.vmem [shape: f32[1,128], index: 3, kind: input, shape index: {}]
  %s4 = inlined_call_operand.vmem [shape: f32[1,128], index: 4, kind: input, shape index: {}]
  %s5 = inlined_call_operand.vmem [shape: f32[1,128], index: 5, kind: input, shape index: {}]
  %s6 = inlined_call_operand.hbm [shape: f32[32,128], index: 6, kind: output, shape index: {}]
  %s7 = sld [smem:[#allocation0]]
  $region46: #{tpu_custom_call.1} parent=0
    _
  %s9 = ssub.s32 1, %s7
  %s10 = scalar_select 0, %s9, %s7
  $region1: #{tpu_custom_call.1} parent=0
    #allocation2 [shape = 'u8[65536]{0}', space=vmem, size = 0x10000, scoped, tag = 'input window, operand 0, single buffered']
    #allocation3 [shape = 's32[1]{0}', space=sflag, size = 0x4, scoped, tag = 'scoped memory for tpu_custom_call.1']
    #allocation4 [shape = 's32[1]{0}', space=sflag, size = 0x4, scoped, tag = 'scoped memory for tpu_custom_call.1']
    #allocation5 [shape = 'u8[16384]{0}', space=vmem, size = 0x4000, scoped, tag = 'input window, operand 1, single buffered']
    #allocation6 [shape = 's32[1]{0}', space=sflag, size = 0x4, scoped, tag = 'scoped memory for tpu_custom_call.1']
    #allocation7 [shape = 'u8[262144]{0}', space=vmem, size = 0x40000, scoped, tag = 'input window, operand 2, single buffered']
    #allocation8 [shape = 'u8[16384]{0}', space=vmem, size = 0x4000, scoped, tag = 'output window, operand 0, single buffered']
    %11 = vsyncpa [#allocation3], 0
    %12 = vsyncpa [#allocation6], 0
    %13 = vsyncpa [#allocation4], 0
    // Predicated region
    $region2: #{tpu_custom_call.1} parent=1 // pred_check
      _
    $region3: #{tpu_custom_call.1} parent=1 // pred_check_branch
      %15 = sbr.rel (0) target = $region5
    $region4: #{tpu_custom_call.1} parent=1 // pred_region
      %s17 = ssub.s32 2048, 2048
      %18 = vsyncadd [#allocation3], %s17
      %s19 = sshll.u32 [#allocation2], 4
      %s20 = int_to_ptr.vmem [resolvable:$true] %s19
      %25 = dma.hbm_to_vmem [thread:$0]  %s0, 2048, %s20, [#allocation3], 512, 512, 32
    $region5: #{tpu_custom_call.1} parent=1 // pred_fallthru
      _
    // Predicated region
    $region6: #{tpu_custom_call.1} parent=1 // pred_check
      _
    $region7: #{tpu_custom_call.1} parent=1 // pred_check_branch
      %27 = sbr.rel (0) target = $region9
    $region8: #{tpu_custom_call.1} parent=1 // pred_region
      %s29 = ssub.s32 512, 512
      %30 = vsyncadd [#allocation6], %s29
      %s31 = sshll.u32 [#allocation5], 4
      %s32 = int_to_ptr.vmem [resolvable:$true] %s31
      %37 = dma.hbm_to_vmem [thread:$0]  %s1, 512, %s32, [#allocation6], 128, 128, 8
    $region9: #{tpu_custom_call.1} parent=1 // pred_fallthru
      _
    // Predicated region
    $region10: #{tpu_custom_call.1} parent=1 // pred_check
      _
    $region11: #{tpu_custom_call.1} parent=1 // pred_check_branch
      %39 = sbr.rel (0) target = $region13
    $region12: #{tpu_custom_call.1} parent=1 // pred_region
      %s41 = ssub.s32 8192, 8192
      %42 = vsyncadd [#allocation6], %s41
      %s43 = sshll.u32 [#allocation7], 4
      %s44 = int_to_ptr.vmem [resolvable:$true] %s43
      %49 = dma.hbm_to_vmem [thread:$0]  %s2, 8192, %s44, [#allocation6], 128, 128, 8
    $region13: #{tpu_custom_call.1} parent=1 // pred_fallthru
      _
    // Predicated region
    $region14: #{tpu_custom_call.1} parent=1 // pred_check
      _
    $region15: #{tpu_custom_call.1} parent=1 // pred_check_branch
      %51 = sbr.rel (0) target = $region17
    $region16: #{tpu_custom_call.1} parent=1 // pred_region
      _
    $region17: #{tpu_custom_call.1} parent=1 // pred_fallthru
      _
    // Predicated region
    $region18: #{tpu_custom_call.1} parent=1 // pred_check
      _
    $region19: #{tpu_custom_call.1} parent=1 // pred_check_branch
      %53 = sbr.rel (0) target = $region21
    $region20: #{tpu_custom_call.1} parent=1 // pred_region
      _
    $region21: #{tpu_custom_call.1} parent=1 // pred_fallthru
      _
    // Predicated region
    $region22: #{tpu_custom_call.1} parent=1 // pred_check
      _
    $region23: #{tpu_custom_call.1} parent=1 // pred_check_branch
      %55 = sbr.rel (0) target = $region25
    $region24: #{tpu_custom_call.1} parent=1 // pred_region
      _
    $region25: #{tpu_custom_call.1} parent=1 // pred_fallthru
      _
    // Predicated region
    $region26: #{tpu_custom_call.1} parent=1 // pred_check
      _
    $region27: #{tpu_custom_call.1} parent=1 // pred_check_branch
      %57 = sbr.rel (0) target = $region29
    $region28: #{tpu_custom_call.1} parent=1 // pred_region
      %58 = dma.done [#allocation3], 2048
    $region29: #{tpu_custom_call.1} parent=1 // pred_fallthru
      _
    // Predicated region
    $region30: #{tpu_custom_call.1} parent=1 // pred_check
      _
    $region31: #{tpu_custom_call.1} parent=1 // pred_check_branch
      %60 = sbr.rel (0) target = $region33
    $region32: #{tpu_custom_call.1} parent=1 // pred_region
      %61 = dma.done [#allocation6], 512
    $region33: #{tpu_custom_call.1} parent=1 // pred_fallthru
      _
    // Predicated region
    $region34: #{tpu_custom_call.1} parent=1 // pred_check
      _
    $region35: #{tpu_custom_call.1} parent=1 // pred_check_branch
      %63 = sbr.rel (0) target = $region37
    $region36: #{tpu_custom_call.1} parent=1 // pred_region
      %64 = dma.done [#allocation6], 8192
    $region37: #{tpu_custom_call.1} parent=1 // pred_fallthru
      _
    %v65 = vld [vmem:[#allocation2] sm:$0xff]
    %v66 = vld [vmem:[#allocation2 + $0x8] sm:$0xff]
    %v67 = vld [vmem:[#allocation2 + $0x10] sm:$0xff]
    %v68 = vld [vmem:[#allocation2 + $0x18] sm:$0xff]
    %v69 = vld [vmem:[#allocation2 + $0x20] sm:$0xff]
    %v70 = vld [vmem:[#allocation2 + $0x28] sm:$0xff]
    %v71 = vld [vmem:[#allocation2 + $0x30] sm:$0xff]
    %v72 = vld [vmem:[#allocation2 + $0x38] sm:$0xff]
    %v73 = vld [vmem:[#allocation2 + $0x40] sm:$0xff]
    %v74 = vld [vmem:[#allocation2 + $0x48] sm:$0xff]
    %v75 = vld [vmem:[#allocation2 + $0x50] sm:$0xff]
    %v76 = vld [vmem:[#allocation2 + $0x58] sm:$0xff]
    %v77 = vld [vmem:[#allocation2 + $0x60] sm:$0xff]
    %v78 = vld [vmem:[#allocation2 + $0x68] sm:$0xff]
    %v79 = vld [vmem:[#allocation2 + $0x70] sm:$0xff]
    %v80 = vld [vmem:[#allocation2 + $0x78] sm:$0xff]
    %v81 = vld [vmem:[#allocation7] sm:$0xff]
    %v82 = vld [vmem:[#allocation7 + $0x8] sm:$0xff]
    %v83 = vld [vmem:[#allocation7 + $0x10] sm:$0xff]
    %v84 = vld [vmem:[#allocation7 + $0x18] sm:$0xff]
    %v85 = vld [vmem:[#allocation7 + $0x20] sm:$0xff]
    %v86 = vld [vmem:[#allocation7 + $0x28] sm:$0xff]
    %v87 = vld [vmem:[#allocation7 + $0x30] sm:$0xff]
    %v88 = vld [vmem:[#allocation7 + $0x38] sm:$0xff]
    %v89 = vld [vmem:[#allocation7 + $0x40] sm:$0xff]
    %v90 = vld [vmem:[#allocation7 + $0x48] sm:$0xff]
    %v91 = vld [vmem:[#allocation7 + $0x50] sm:$0xff]
    %v92 = vld [vmem:[#allocation7 + $0x58] sm:$0xff]
    %v93 = vld [vmem:[#allocation7 + $0x60] sm:$0xff]
    %v94 = vld [vmem:[#allocation7 + $0x68] sm:$0xff]
    %v95 = vld [vmem:[#allocation7 + $0x70] sm:$0xff]
    %v96 = vld [vmem:[#allocation7 + $0x78] sm:$0xff]
    %v97 = vld [vmem:[#allocation7 + $0x80] sm:$0xff]
    %v98 = vld [vmem:[#allocation7 + $0x88] sm:$0xff]
    %v99 = vld [vmem:[#allocation7 + $0x90] sm:$0xff]
    %v100 = vld [vmem:[#allocation7 + $0x98] sm:$0xff]
    %v101 = vld [vmem:[#allocation7 + $0xa0] sm:$0xff]
    %v102 = vld [vmem:[#allocation7 + $0xa8] sm:$0xff]
    %v103 = vld [vmem:[#allocation7 + $0xb0] sm:$0xff]
    %v104 = vld [vmem:[#allocation7 + $0xb8] sm:$0xff]
    %v105 = vld [vmem:[#allocation7 + $0xc0] sm:$0xff]
    %v106 = vld [vmem:[#allocation7 + $0xc8] sm:$0xff]
    %v107 = vld [vmem:[#allocation7 + $0xd0] sm:$0xff]
    %v108 = vld [vmem:[#allocation7 + $0xd8] sm:$0xff]
    %v109 = vld [vmem:[#allocation7 + $0xe0] sm:$0xff]
    %v110 = vld [vmem:[#allocation7 + $0xe8] sm:$0xff]
    %v111 = vld [vmem:[#allocation7 + $0xf0] sm:$0xff]
    %v112 = vld [vmem:[#allocation7 + $0xf8] sm:$0xff]
    %v113 = vld [vmem:[#allocation7 + $0x100] sm:$0xff]
    %v114 = vld [vmem:[#allocation7 + $0x108] sm:$0xff]
    %v115 = vld [vmem:[#allocation7 + $0x110] sm:$0xff]
    %v116 = vld [vmem:[#allocation7 + $0x118] sm:$0xff]
    %v117 = vld [vmem:[#allocation7 + $0x120] sm:$0xff]
    %v118 = vld [vmem:[#allocation7 + $0x128] sm:$0xff]
    %v119 = vld [vmem:[#allocation7 + $0x130] sm:$0xff]
    %v120 = vld [vmem:[#allocation7 + $0x138] sm:$0xff]
    %v121 = vld [vmem:[#allocation7 + $0x140] sm:$0xff]
    %v122 = vld [vmem:[#allocation7 + $0x148] sm:$0xff]
    %v123 = vld [vmem:[#allocation7 + $0x150] sm:$0xff]
    %v124 = vld [vmem:[#allocation7 + $0x158] sm:$0xff]
    %v125 = vld [vmem:[#allocation7 + $0x160] sm:$0xff]
    %v126 = vld [vmem:[#allocation7 + $0x168] sm:$0xff]
    %v127 = vld [vmem:[#allocation7 + $0x170] sm:$0xff]
    %v128 = vld [vmem:[#allocation7 + $0x178] sm:$0xff]
    %v129 = vld [vmem:[#allocation7 + $0x180] sm:$0xff]
    %v130 = vld [vmem:[#allocation7 + $0x188] sm:$0xff]
    %v131 = vld [vmem:[#allocation7 + $0x190] sm:$0xff]
    %v132 = vld [vmem:[#allocation7 + $0x198] sm:$0xff]
    %v133 = vld [vmem:[#allocation7 + $0x1a0] sm:$0xff]
    %v134 = vld [vmem:[#allocation7 + $0x1a8] sm:$0xff]
    %v135 = vld [vmem:[#allocation7 + $0x1b0] sm:$0xff]
    %v136 = vld [vmem:[#allocation7 + $0x1b8] sm:$0xff]
    %v137 = vld [vmem:[#allocation7 + $0x1c0] sm:$0xff]
    %v138 = vld [vmem:[#allocation7 + $0x1c8] sm:$0xff]
    %v139 = vld [vmem:[#allocation7 + $0x1d0] sm:$0xff]
    %v140 = vld [vmem:[#allocation7 + $0x1d8] sm:$0xff]
    %v141 = vld [vmem:[#allocation7 + $0x1e0] sm:$0xff]
    %v142 = vld [vmem:[#allocation7 + $0x1e8] sm:$0xff]
    %v143 = vld [vmem:[#allocation7 + $0x1f0] sm:$0xff]
    %v144 = vld [vmem:[#allocation7 + $0x1f8] sm:$0xff]
    %v145 = vld [vmem:[%s3] sm:$0x1]
    %v146 = vld [vmem:[#allocation5] sm:$0xff]
    %v147 = vld [vmem:[#allocation5 + $0x8] sm:$0xff]
    %v148 = vld [vmem:[#allocation5 + $0x10] sm:$0xff]
    %v149 = vld [vmem:[#allocation5 + $0x18] sm:$0xff]
    %v151 = vlaneseq
    %v152 = vshrl.u32 %v151, 7
    %v153 = vsub.s32 0, %v152
    %v154 = vrot.slane %v145, %v153
    %v156 = vadd.f32 %v146, %v154
    %v157 = vadd.f32 %v147, %v154
    %v158 = vadd.f32 %v148, %v154
    %v159 = vadd.f32 %v149, %v154
    %160 = vmatprep.subr.mxu0 0.0
    %161 = vmatpush1.msra.mxu0 %v81
    %162 = vmatprep.subr.mxu0 0.0
    %163 = vmatpush1.msra.mxu0 %v82
    %164 = vmatprep.subr.mxu0 0.0
    %165 = vmatpush1.msra.mxu0 %v83
    %166 = vmatprep.subr.mxu0 0.0
    %167 = vmatpush1.msra.mxu0 %v84
    %168 = vmatprep.subr.mxu0 0.0
    %169 = vmatpush1.msra.mxu0 %v85
    %170 = vmatprep.subr.mxu0 0.0
    %171 = vmatpush1.msra.mxu0 %v86
    %172 = vmatprep.subr.mxu0 0.0
    %173 = vmatpush1.msra.mxu0 %v87
    %174 = vmatprep.subr.mxu0 0.0
    %175 = vmatpush1.msra.mxu0 %v88
    %176 = vmatprep.subr.mxu0 0.0
    %177 = vmatpush1.msra.mxu0 %v89
    %178 = vmatprep.subr.mxu0 0.0
    %179 = vmatpush1.msra.mxu0 %v90
    %180 = vmatprep.subr.mxu0 0.0
    %181 = vmatpush1.msra.mxu0 %v91
    %182 = vmatprep.subr.mxu0 0.0
    %183 = vmatpush1.msra.mxu0 %v92
    %184 = vmatprep.subr.mxu0 0.0
    %185 = vmatpush1.msra.mxu0 %v93
    %186 = vmatprep.subr.mxu0 0.0
    %187 = vmatpush1.msra.mxu0 %v94
    %188 = vmatprep.subr.mxu0 0.0
    %189 = vmatpush1.msra.mxu0 %v95
    %190 = vmatprep.subr.mxu0 0.0
    %191 = vmatpush1.msra.mxu0 %v96
    %192 = vmatprep.subr.mxu0 0.0
    %193 = vmatpush1.msra.mxu0 %v97
    %194 = vmatprep.subr.mxu0 0.0
    %195 = vmatpush1.msra.mxu0 %v98
    %196 = vmatprep.subr.mxu0 0.0
    %197 = vmatpush1.msra.mxu0 %v99
    %198 = vmatprep.subr.mxu0 0.0
    %199 = vmatpush1.msra.mxu0 %v100
    %200 = vmatprep.subr.mxu0 0.0
    %201 = vmatpush1.msra.mxu0 %v101
    %202 = vmatprep.subr.mxu0 0.0
    %203 = vmatpush1.msra.mxu0 %v102
    %204 = vmatprep.subr.mxu0 0.0
    %205 = vmatpush1.msra.mxu0 %v103
    %206 = vmatprep.subr.mxu0 0.0
    %207 = vmatpush1.msra.mxu0 %v104
    %208 = vmatprep.subr.mxu0 0.0
    %209 = vmatpush1.msra.mxu0 %v105
    %210 = vmatprep.subr.mxu0 0.0
    %211 = vmatpush1.msra.mxu0 %v106
    %212 = vmatprep.subr.mxu0 0.0
    %213 = vmatpush1.msra.mxu0 %v107
    %214 = vmatprep.subr.mxu0 0.0
    %215 = vmatpush1.msra.mxu0 %v108
    %216 = vmatprep.subr.mxu0 0.0
    %217 = vmatpush1.msra.mxu0 %v109
    %218 = vmatprep.subr.mxu0 0.0
    %219 = vmatpush1.msra.mxu0 %v110
    %220 = vmatprep.subr.mxu0 0.0
    %221 = vmatpush1.msra.mxu0 %v111
    %222 = vmatprep.subr.mxu0 0.0
    %223 = vmatpush1.msra.mxu0 %v112
    %224 = vmatprep.mubr.f32.mxu0 %v66
    %225 = vmatmul.mubr.f32.gmra.mrb[0].mxu0 %v65
    %v226 = vpop.f32.mrb[0].mxu0
    %v227 = vadd.f32 %v156, %v226
    %v228 = vpop.f32.mrb[0].mxu0
    %229 = vmatprep.mubr.f32.mxu0 %v70
    %230 = vmatmul.mubr.f32.gmra.mrb[0].mxu0 %v69
    %v231 = vpop.f32.mrb[0].mxu0
    %v232 = vadd.f32 %v157, %v231
    %v233 = vpop.f32.mrb[0].mxu0
    %234 = vmatprep.mubr.f32.mxu0 %v74
    %235 = vmatmul.mubr.f32.gmra.mrb[0].mxu0 %v73
    %v236 = vpop.f32.mrb[0].mxu0
    %v237 = vadd.f32 %v158, %v236
    %v238 = vpop.f32.mrb[0].mxu0
    %239 = vmatprep.mubr.f32.mxu0 %v78
    %240 = vmatmul.mubr.f32.gmra.mrb[0].mxu0 %v77
    %v241 = vpop.f32.mrb[0].mxu0
    %v242 = vadd.f32 %v159, %v241
    %v243 = vpop.f32.mrb[0].mxu0
    %244 = vdwg.mxu0
    %245 = vmatprep.subr.mxu0 0.0
    %246 = vmatpush1.msra.mxu0 %v113
    %247 = vmatprep.subr.mxu0 0.0
    %248 = vmatpush1.msra.mxu0 %v114
    %249 = vmatprep.subr.mxu0 0.0
    %250 = vmatpush1.msra.mxu0 %v115
    %251 = vmatprep.subr.mxu0 0.0
    %252 = vmatpush1.msra.mxu0 %v116
    %253 = vmatprep.subr.mxu0 0.0
    %254 = vmatpush1.msra.mxu0 %v117
    %255 = vmatprep.subr.mxu0 0.0
    %256 = vmatpush1.msra.mxu0 %v118
    %257 = vmatprep.subr.mxu0 0.0
    %258 = vmatpush1.msra.mxu0 %v119
    %259 = vmatprep.subr.mxu0 0.0
    %260 = vmatpush1.msra.mxu0 %v120
    %261 = vmatprep.subr.mxu0 0.0
    %262 = vmatpush1.msra.mxu0 %v121
    %263 = vmatprep.subr.mxu0 0.0
    %264 = vmatpush1.msra.mxu0 %v122
    %265 = vmatprep.subr.mxu0 0.0
    %266 = vmatpush1.msra.mxu0 %v123
    %267 = vmatprep.subr.mxu0 0.0
    %268 = vmatpush1.msra.mxu0 %v124
    %269 = vmatprep.subr.mxu0 0.0
    %270 = vmatpush1.msra.mxu0 %v125
    %271 = vmatprep.subr.mxu0 0.0
    %272 = vmatpush1.msra.mxu0 %v126
    %273 = vmatprep.subr.mxu0 0.0
    %274 = vmatpush1.msra.mxu0 %v127
    %275 = vmatprep.subr.mxu0 0.0
    %276 = vmatpush1.msra.mxu0 %v128
    %277 = vmatprep.subr.mxu0 0.0
    %278 = vmatpush1.msra.mxu0 %v129
    %279 = vmatprep.subr.mxu0 0.0
    %280 = vmatpush1.msra.mxu0 %v130
    %281 = vmatprep.subr.mxu0 0.0
    %282 = vmatpush1.msra.mxu0 %v131
    %283 = vmatprep.subr.mxu0 0.0
    %284 = vmatpush1.msra.mxu0 %v132
    %285 = vmatprep.subr.mxu0 0.0
    %286 = vmatpush1.msra.mxu0 %v133
    %287 = vmatprep.subr.mxu0 0.0
    %288 = vmatpush1.msra.mxu0 %v134
    %289 = vmatprep.subr.mxu0 0.0
    %290 = vmatpush1.msra.mxu0 %v135
    %291 = vmatprep.subr.mxu0 0.0
    %292 = vmatpush1.msra.mxu0 %v136
    %293 = vmatprep.subr.mxu0 0.0
    %294 = vmatpush1.msra.mxu0 %v137
    %295 = vmatprep.subr.mxu0 0.0
    %296 = vmatpush1.msra.mxu0 %v138
    %297 = vmatprep.subr.mxu0 0.0
    %298 = vmatpush1.msra.mxu0 %v139
    %299 = vmatprep.subr.mxu0 0.0
    %300 = vmatpush1.msra.mxu0 %v140
    %301 = vmatprep.subr.mxu0 0.0
    %302 = vmatpush1.msra.mxu0 %v141
    %303 = vmatprep.subr.mxu0 0.0
    %304 = vmatpush1.msra.mxu0 %v142
    %305 = vmatprep.subr.mxu0 0.0
    %306 = vmatpush1.msra.mxu0 %v143
    %307 = vmatprep.subr.mxu0 0.0
    %308 = vmatpush1.msra.mxu0 %v144
    %309 = vmatprep.mubr.f32.mxu0 %v68
    %310 = vmatmul.mubr.f32.gmra.mrb[0].mxu0 %v67
    %v311 = vpop.f32.mrb[0].mxu0
    %v312 = vadd.f32 %v227, %v311
    %v313 = vpop.f32.mrb[0].mxu0
    %314 = vmatprep.mubr.f32.mxu0 %v72
    %315 = vmatmul.mubr.f32.gmra.mrb[0].mxu0 %v71
    %v316 = vpop.f32.mrb[0].mxu0
    %v317 = vadd.f32 %v232, %v316
    %v318 = vpop.f32.mrb[0].mxu0
    %319 = vmatprep.mubr.f32.mxu0 %v76
    %320 = vmatmul.mubr.f32.gmra.mrb[0].mxu0 %v75
    %v321 = vpop.f32.mrb[0].mxu0
    %v322 = vadd.f32 %v237, %v321
    %v323 = vpop.f32.mrb[0].mxu0
    %324 = vmatprep.mubr.f32.mxu0 %v80
    %325 = vmatmul.mubr.f32.gmra.mrb[0].mxu0 %v79
    %v326 = vpop.f32.mrb[0].mxu0
    %v327 = vadd.f32 %v242, %v326
    %v328 = vpop.f32.mrb[0].mxu0
    %329 = vdwg.mxu0
    %330 = vadd.xlane.f32.xlu0 %v312
    %v331 = vpop.xlane.xlu0 %330
    %332 = vadd.xlane.f32.xlu0 %v317
    %v333 = vpop.xlane.xlu0 %332
    %334 = vadd.xlane.f32.xlu0 %v322
    %v335 = vpop.xlane.xlu0 %334
    %336 = vadd.xlane.f32.xlu0 %v327
    %v337 = vpop.xlane.xlu0 %336
    %v338 = vrcp.pop 128.0
    %v339 = vmul.f32 %v331, %v338
    %v340 = vmul.f32 %v333, %v338
    %v341 = vmul.f32 %v335, %v338
    %v342 = vmul.f32 %v337, %v338
    %v343 = vmul.f32 %v312, %v312
    %v344 = vmul.f32 %v317, %v317
    %v345 = vmul.f32 %v322, %v322
    %v346 = vmul.f32 %v327, %v327
    %347 = vadd.xlane.f32.xlu0 %v343
    %v348 = vpop.xlane.xlu0 %347
    %349 = vadd.xlane.f32.xlu0 %v344
    %v350 = vpop.xlane.xlu0 %349
    %351 = vadd.xlane.f32.xlu0 %v345
    %v352 = vpop.xlane.xlu0 %351
    %353 = vadd.xlane.f32.xlu0 %v346
    %v354 = vpop.xlane.xlu0 %353
    %v355 = vmul.f32 %v348, %v338
    %v356 = vmul.f32 %v350, %v338
    %v357 = vmul.f32 %v352, %v338
    %v358 = vmul.f32 %v354, %v338
    %v359 = vmul.f32 %v339, %v339
    %v360 = vmul.f32 %v340, %v340
    %v361 = vmul.f32 %v341, %v341
    %v362 = vmul.f32 %v342, %v342
    %v363 = vsub.f32 %v355, %v359
    %v364 = vsub.f32 %v356, %v360
    %v365 = vsub.f32 %v357, %v361
    %v366 = vsub.f32 %v358, %v362
    %v367 = vmax.f32 %v363, 0.0
    %v368 = vmax.f32 %v364, 0.0
    %v369 = vmax.f32 %v365, 0.0
    %v370 = vmax.f32 %v366, 0.0
    %v371 = vadd.f32 %v367, 1e-12
    %v372 = vadd.f32 %v368, 1e-12
    %v373 = vadd.f32 %v369, 1e-12
    %v374 = vadd.f32 %v370, 1e-12
    %v375 = vrsqrt.pop %v371
    %v376 = vrsqrt.pop %v372
    %v377 = vrsqrt.pop %v373
    %v378 = vrsqrt.pop %v374
    %v379 = vld [vmem:[%s4] sm:$0x1]
    %v380 = vld [vmem:[%s5] sm:$0x1]
    %v381 = vsub.f32 %v312, %v339
    %v382 = vsub.f32 %v317, %v340
    %v383 = vsub.f32 %v322, %v341
    %v384 = vsub.f32 %v327, %v342
    %v385 = vmul.f32 %v381, %v375
    %v386 = vmul.f32 %v382, %v376
    %v387 = vmul.f32 %v383, %v377
    %v388 = vmul.f32 %v384, %v378
    %v390 = vlaneseq
    %v391 = vshrl.u32 %v390, 7
    %v392 = vsub.s32 0, %v391
    %v393 = vrot.slane %v379, %v392
    %v395 = vmul.f32 %v385, %v393
    %v396 = vmul.f32 %v386, %v393
    %v397 = vmul.f32 %v387, %v393
    %v398 = vmul.f32 %v388, %v393
    %v400 = vlaneseq
    %v401 = vshrl.u32 %v400, 7
    %v402 = vsub.s32 0, %v401
    %v403 = vrot.slane %v380, %v402
    %v405 = vadd.f32 %v395, %v403
    %v406 = vadd.f32 %v396, %v403
    %v407 = vadd.f32 %v397, %v403
    %v408 = vadd.f32 %v398, %v403
    %409 = vst [vmem:[#allocation8] sm:$0xff] %v405
    %410 = vst [vmem:[#allocation8 + $0x8] sm:$0xff] %v406
    %411 = vst [vmem:[#allocation8 + $0x10] sm:$0xff] %v407
    %412 = vst [vmem:[#allocation8 + $0x18] sm:$0xff] %v408
    // Predicated region
    $region38: #{tpu_custom_call.1} parent=1 // pred_check
      _
    $region39: #{tpu_custom_call.1} parent=1 // pred_check_branch
      %414 = sbr.rel (0) target = $region41
    $region40: #{tpu_custom_call.1} parent=1 // pred_region
      %s416 = ssub.s32 512, 512
      %417 = vsyncadd [#allocation4], %s416
      %s418 = sshll.u32 [#allocation8], 4
      %s419 = int_to_ptr.vmem [resolvable:$true] %s418
      %424 = dma.vmem_to_hbm [thread:$0]  %s419, 512, %s6, [#allocation4], 128, 128, 8
    $region41: #{tpu_custom_call.1} parent=1 // pred_fallthru
      _
    // Predicated region
    $region42: #{tpu_custom_call.1} parent=1 // pred_check
      _
    $region43: #{tpu_custom_call.1} parent=1 // pred_check_branch
      %426 = sbr.rel (0) target = $region45
    $region44: #{tpu_custom_call.1} parent=1 // pred_region
      %427 = dma.done [#allocation4], 512
    $region45: #{tpu_custom_call.1} parent=1 // pred_fallthru
      _
    %428 = vsyncpa [#allocation3], 1
    %429 = vsyncpa [#allocation6], 1
    %430 = vsyncpa [#allocation4], 1

</llo_original>
